<compile_context>
chip_gen: v6e
topology: v6e:2x2x1
jax: 0.10.0
libtpu: 0.0.40
codegen_flags: <defaults>
</compile_context>

<pallas_src>
import functools

import jax
import jax.numpy as jnp
from jax import lax
from jax.experimental import pallas as pl
from jax.experimental.pallas import tpu as pltpu


def _round_up(x, m):
    return (x + m - 1) // m * m


def _cdiv(a, b):
    return -(-a // b)


def _sublane(dtype):
    """Second-to-last block-dim alignment for a dtype (packing-aware)."""
    itemsize = jnp.dtype(dtype).itemsize
    return {4: 8, 2: 16, 1: 32}.get(itemsize, 8)


def _pick_tile(dim, cap, align):
    """Largest legal tile <= cap leaving at most one partial tail tile.

    dim <= cap -> the full extent (always a legal block dim, zero waste).
    dim >  cap -> ceil(dim/cap) nearly-equal, `align`-rounded tiles.
    """
    if dim <= cap:
        return dim
    nsteps = _cdiv(dim, cap)
    return _round_up(_cdiv(dim, nsteps), align)


# ---------------------------------------------------------------------------
# Fast path: in_dim == out_dim == 1  ->  lane-dense VPU FMA, no MXU.
# ---------------------------------------------------------------------------
def _scalar_fma_kernel(x_ref, w_ref, b_ref, o_ref):
    # x_ref: (tm, 128) VMEM tile; w_ref / b_ref: (1,) SMEM scalars.
    o_ref[...] = (x_ref[...] * w_ref[0] + b_ref[0]).astype(o_ref.dtype)


def _linear_scalar(x, weight, bias):
    n = x.shape[0]
    lanes = 128
    sub = _sublane(x.dtype)
    rows = _cdiv(n, lanes)

    aligned = (n % lanes == 0)
    if aligned:
        x2 = x.reshape(rows, lanes)          # free view: no extra HBM pass
    else:
        # Ragged N (e.g. the spec's batch=8): pad the flat vector to a whole
        # 128-lane row.  Large-N cases are lane-aligned and hit the copy-free
        # branch above; the row tail is handled by Pallas partial blocks.
        x2 = jnp.pad(x.reshape(-1), (0, rows * lanes - n)).reshape(rows, lanes)

    # Big row tiles (~1 MiB) to amortize per-grid-step overhead; keep >=2
    # blocks when possible so v7x's two TensorCores both get work.
    tm = _pick_tile(rows, 2048, sub)
    if tm == rows and rows >= 2 * sub:
        tm = _round_up(_cdiv(rows, 2), sub)
    grid = (_cdiv(rows, tm),)

    out = pl.pallas_call(
        _scalar_fma_kernel,
        out_shape=jax.ShapeDtypeStruct((rows, lanes), x.dtype),
        grid_spec=pltpu.PrefetchScalarGridSpec(
            num_scalar_prefetch=0,
            grid=grid,
            in_specs=[
                pl.BlockSpec((tm, lanes), lambda i: (i, 0)),
                pl.BlockSpec(memory_space=pltpu.MemorySpace.SMEM),
                pl.BlockSpec(memory_space=pltpu.MemorySpace.SMEM),
            ],
            out_specs=pl.BlockSpec((tm, lanes), lambda i: (i, 0)),
        ),
        compiler_params=pltpu.CompilerParams(
            dimension_semantics=("parallel",),
        ),
    )(x2, weight.reshape(1), bias.reshape(1))

    if aligned:
        return out.reshape(n, 1)             # free view
    return out.reshape(-1)[:n].reshape(n, 1)


# ---------------------------------------------------------------------------
# General path: tiled MXU matmul, K-reduction last, f32 VMEM accumulator.
# ---------------------------------------------------------------------------
def _linear_tiled_kernel(x_ref, w_ref, b_ref, o_ref, acc_ref, *,
                         in_dim, tk, mask_k_tail, compute_dtype):
    k = pl.program_id(2)

    # Fold bias into accumulator init (saves a tm x tn VPU add + zero fill).
    @pl.when(k == 0)
    def _():
        acc_ref[...] = jnp.broadcast_to(b_ref[...], acc_ref.shape).astype(jnp.float32)

    x_tile = x_ref[...]
    if mask_k_tail:
        # x is not padded along K; zero its out-of-range tail columns so they
        # multiply W's (genuinely zero-padded) tail rows to exact zeros.
        col = lax.broadcasted_iota(jnp.int32, x_tile.shape, 1) + k * tk
        x_tile = jnp.where(col < in_dim, x_tile, jnp.zeros_like(x_tile))
    w_tile = w_ref[...]
    if compute_dtype is not None:
        x_tile = x_tile.astype(compute_dtype)
        w_tile = w_tile.astype(compute_dtype)

    # W pre-transposed to (in, out) in the wrapper: contract x dim 1 with W
    # dim 0, so no per-tile transpose competes with the MXU push.
    acc_ref[...] += lax.dot_general(
        x_tile, w_tile,
        dimension_numbers=(((1,), (0,)), ((), ())),
        preferred_element_type=jnp.float32,
    )

    @pl.when(k == pl.num_programs(2) - 1)
    def _():
        o_ref[...] = acc_ref[...].astype(o_ref.dtype)


def _linear_tiled(x, weight, bias, compute_dtype=None):
    n, in_dim = x.shape
    out_dim = weight.shape[0]
    sub = _sublane(x.dtype)

    # Tile caps (f32 worst case ~18 MiB of double-buffered VMEM): inside every
    # generation's physical VMEM once vmem_limit_bytes is raised below.
    TM_CAP, TN_CAP, TK_CAP = 1024, 512, 1024

    tm = _pick_tile(n, TM_CAP, sub)
    tn = _pick_tile(out_dim, TN_CAP, 128)
    tk = _pick_tile(in_dim, TK_CAP, 128)

    grid_i = _cdiv(n, tm)
    grid_j = _cdiv(out_dim, tn)

    # v7x: guarantee >= 2 blocks along the parallel (i, j) axes when the
    # problem allows, so both TensorCores get work (no-op on v5e/v6e, 1 TC).
    if grid_i * grid_j == 1:
        if n >= 2 * sub:
            tm = _round_up(_cdiv(n, 2), sub)
            grid_i = _cdiv(n, tm)
        elif out_dim >= 256:
            tn = _round_up(_cdiv(out_dim, 2), 128)
            grid_j = _cdiv(out_dim, tn)

    grid_k = _cdiv(in_dim, tk)

    # One-time transpose of W to (in, out): a single small HBM pass, amortized
    # over the whole N grid.
    wt = weight.T
    b2 = bias.reshape(1, out_dim)

    # x is NEVER padded (no extra HBM pass over the activation) and the output
    # is exact-shaped (no slice copy).  Only the K axis needs real zeros, only
    # when K is both multi-step and ragged, and only on W's (cheap) side; x's
    # ragged K tail is masked in-kernel.
    mask_k_tail = (grid_k > 1) and (in_dim % tk != 0)
    if mask_k_tail:
        wt = jnp.pad(wt, ((0, grid_k * tk - in_dim), (0, 0)))

    if compute_dtype is not None:
        wt = wt.astype(compute_dtype)    # W tiles stream at half width

    kernel = functools.partial(
        _linear_tiled_kernel,
        in_dim=in_dim, tk=tk, mask_k_tail=mask_k_tail,
        compute_dtype=compute_dtype)

    return pl.pallas_call(
        kernel,
        out_shape=jax.ShapeDtypeStruct((n, out_dim), x.dtype),
        grid_spec=pltpu.PrefetchScalarGridSpec(
            num_scalar_prefetch=0,
            grid=(grid_i, grid_j, grid_k),           # K reduction last
            in_specs=[
                pl.BlockSpec((tm, tk), lambda i, j, k: (i, k)),   # x tile
                pl.BlockSpec((tk, tn), lambda i, j, k: (k, j)),   # W.T tile
                pl.BlockSpec((1, tn), lambda i, j, k: (0, j)),    # bias
            ],
            out_specs=pl.BlockSpec((tm, tn), lambda i, j, k: (i, j)),
            scratch_shapes=[pltpu.VMEM((tm, tn), jnp.float32)],
        ),
        compiler_params=pltpu.CompilerParams(
            dimension_semantics=("parallel", "parallel", "arbitrary"),
            vmem_limit_bytes=48 * 1024 * 1024,
        ),
    )(x, wt, b2)


def linear_regression_forward(x, weight, bias, compute_dtype=None):
    """x: (N, input_size); weight: (output_size, input_size); bias: (output_size,)."""
    n, in_dim = x.shape
    out_dim = weight.shape[0]
    if in_dim == 1 and out_dim == 1:
        # TODO(synk): a broadcast-FMA/reduce VPU path for general
        # in_dim/out_dim < 128 (beyond the 1x1 module spec) would also avoid
        # near-empty MXU tiles for other skinny layers.
        return _linear_scalar(x, weight, bias)
    return _linear_tiled(x, weight, bias, compute_dtype)


if __name__ == "__main__":
    key = jax.random.PRNGKey(0)
    keys = jax.random.split(key, 9)

    # --- Shapes implied by the module spec: input_size = output_size = 1 ---
    input_size, output_size, batch = 1, 1, 8
    bound = 1.0 / (input_size ** 0.5)
    weight = jax.random.uniform(keys[0], (output_size, input_size),
                                minval=-bound, maxval=bound, dtype=jnp.float32)
    bias = jax.random.uniform(keys[1], (output_size,),
                              minval=-bound, maxval=bound, dtype=jnp.float32)
    x = jax.random.normal(keys[2], (batch, input_size), dtype=jnp.float32)

    out = linear_regression_forward(x, weight, bias)
    jax.block_until_ready(out)
    ref = x @ weight.T + bias
    assert out.shape == (batch, output_size)
    assert jnp.allclose(out, ref, atol=1e-5, rtol=1e-5)

    # --- General tiled MXU path (wider layer; exercises v7x 2-block split) ---
    n2, in2, out2 = 256, 384, 192
    w2 = jax.random.normal(keys[3], (out2, in2), dtype=jnp.float32) * 0.02
    b2 = jax.random.normal(keys[4], (out2,), dtype=jnp.float32)
    x2 = jax.random.normal(keys[5], (n2, in2), dtype=jnp.float32)

    out_big = linear_regression_forward(x2, w2, b2)
    jax.block_until_ready(out_big)
    ref_big = x2 @ w2.T + b2
    assert out_big.shape == (n2, out2)
    assert jnp.allclose(out_big, ref_big, atol=1e-3, rtol=1e-3)

    # Same layer with bf16 MXU compute (f32 accumulate) -- optional fast mode.
    out_bf16 = linear_regression_forward(x2, w2, b2, compute_dtype=jnp.bfloat16)
    jax.block_until_ready(out_bf16)
    assert jnp.allclose(out_bf16, ref_big, atol=2e-2, rtol=2e-2)

    # --- Multi-step ragged K: exercises in-kernel K-tail masking, no x pad ---
    n3, in3, out3 = 64, 1100, 96
    w3 = jax.random.normal(keys[6], (out3, in3), dtype=jnp.float32) * 0.02
    b3 = jax.random.normal(keys[7], (out3,), dtype=jnp.float32)
    x3 = jax.random.normal(keys[8], (n3, in3), dtype=jnp.float32)

    out_k = linear_regression_forward(x3, w3, b3)
    jax.block_until_ready(out_k)
    ref_k = x3 @ w3.T + b3
    assert out_k.shape == (n3, out3)
    assert jnp.allclose(out_k, ref_k, atol=1e-3, rtol=1e-3)

    print("KERNEL_OK")
</pallas_src>

<mosaic_0001>
module attributes {stable_mosaic.version = 11 : i64} {
  func.func @_scalar_fma_kernel(%arg0: i32, %arg1: memref<1x128xf32, #tpu.memory_space<vmem>>, %arg2: memref<1xf32, #tpu.memory_space<smem>>, %arg3: memref<1xf32, #tpu.memory_space<smem>>, %arg4: memref<1x128xf32, #tpu.memory_space<vmem>>) attributes {dimension_semantics = [#tpu.dimension_semantics<parallel>], iteration_bounds = array<i64: 1>, scalar_prefetch = 0 : i64, scratch_operands = 0 : i64, tpu.core_type = #tpu.core_type<tc>, window_params = [{transform_indices = @transform_0, window_bounds = array<i64: 1, 128>}, {transform_indices = @transform_1, window_bounds = array<i64: 1>}, {transform_indices = @transform_2, window_bounds = array<i64: 1>}, {transform_indices = @transform_3, window_bounds = array<i64: 1, 128>}]} {
    %c0 = arith.constant 0 : index
    %c0_0 = arith.constant 0 : index
    %0 = vector.load %arg1[%c0, %c0_0] : memref<1x128xf32, #tpu.memory_space<vmem>>, vector<1x128xf32>
    %c0_1 = arith.constant 0 : index
    %1 = memref.load %arg2[%c0_1] : memref<1xf32, #tpu.memory_space<smem>>
    %2 = vector.broadcast %1 : f32 to vector<1x128xf32>
    %3 = arith.mulf %0, %2 : vector<1x128xf32>
    %c0_2 = arith.constant 0 : index
    %4 = memref.load %arg3[%c0_2] : memref<1xf32, #tpu.memory_space<smem>>
    %5 = vector.broadcast %4 : f32 to vector<1x128xf32>
    %6 = arith.addf %3, %5 : vector<1x128xf32>
    %c0_3 = arith.constant 0 : index
    %c0_4 = arith.constant 0 : index
    %7 = vector.load %arg4[%c0_3, %c0_4] : memref<1x128xf32, #tpu.memory_space<vmem>>, vector<1x128xf32>
    tpu.vector_store %arg4[%c0_3, %c0_4], %6 {strides = array<i32>} : memref<1x128xf32, #tpu.memory_space<vmem>>, vector<1x128xf32>,
    return
  }
  func.func @transform_0(%arg0: i32) -> (i32, i32) {
    %c0_i32 = arith.constant 0 : i32
    %c0_i32_0 = arith.constant 0 : i32
    return %arg0, %c0_i32 : i32, i32
  }
  func.func @transform_1(%arg0: i32) -> i32 {
    %c0_i32 = arith.constant 0 : i32
    %c0_i32_0 = arith.constant 0 : i32
    return %c0_i32 : i32
  }
  func.func @transform_2(%arg0: i32) -> i32 {
    %c0_i32 = arith.constant 0 : i32
    %c0_i32_0 = arith.constant 0 : i32
    return %c0_i32 : i32
  }
  func.func @transform_3(%arg0: i32) -> (i32, i32) {
    %c0_i32 = arith.constant 0 : i32
    %c0_i32_0 = arith.constant 0 : i32
    return %arg0, %c0_i32 : i32, i32
  }
}

</mosaic_0001>

<llo_original>
// kernel: tpu_custom_call.1
$region0: #{tpu_custom_call.1}
  #allocation0 [shape = 'u32[]', space=smem, size = 0x4, offset = 0x4, fixed_abs, tag = 'smem constant byte address 0x4 - core index']
  #allocation1 [shape = 'u32[144,128]{1,0:T(1,128)}', space=vmem, size = 0x12000, scoped, tag = 'internal scratch']
  #allocation2 [shape = 'f32[1]{0:T(128)S(6)}', space=smem, size = 0x200, scoped, tag = 'scoped memory for tpu_custom_call.1']
  #allocation3 [shape = 'f32[1]{0:T(128)S(6)}', space=smem, size = 0x200, scoped, tag = 'scoped memory for tpu_custom_call.1']
  %s0 = inlined_call_operand.vmem [shape: f32[1,128], index: 0, kind: input, shape index: {}]
  %s1 = inlined_call_operand.<no memory space> [shape: f32[1], index: 1, kind: input, shape index: {}]
  %s2 = inlined_call_operand.<no memory space> [shape: f32[1], index: 2, kind: input, shape index: {}]
  %s3 = inlined_call_operand.hbm [shape: f32[1,128], index: 3, kind: output, shape index: {}]
  %s4 = sld [smem:[#allocation0]]
  $region22: #{tpu_custom_call.1} parent=0
    _
  %s6 = ssub.s32 1, %s4
  %s7 = scalar_select 0, %s6, %s4
  %8 = sst [smem:[#allocation2]] %s1
  %9 = sst [smem:[#allocation3]] %s2
  $region1: #{tpu_custom_call.1} parent=0
    #allocation4 [shape = 'u8[512]{0}', space=vmem, size = 0x400, scoped, tag = 'output window, operand 0, single buffered']
    #allocation5 [shape = 's32[1]{0}', space=sflag, size = 0x4, scoped, tag = 'scoped memory for tpu_custom_call.1']
    %10 = vsyncpa [#allocation5], 0
    // Predicated region
    $region2: #{tpu_custom_call.1} parent=1 // pred_check
      _
    $region3: #{tpu_custom_call.1} parent=1 // pred_check_branch
      %12 = sbr.rel (0) target = $region5
    $region4: #{tpu_custom_call.1} parent=1 // pred_region
      _
    $region5: #{tpu_custom_call.1} parent=1 // pred_fallthru
      _
    // Predicated region
    $region6: #{tpu_custom_call.1} parent=1 // pred_check
      _
    $region7: #{tpu_custom_call.1} parent=1 // pred_check_branch
      %14 = sbr.rel (0) target = $region9
    $region8: #{tpu_custom_call.1} parent=1 // pred_region
      _
    $region9: #{tpu_custom_call.1} parent=1 // pred_fallthru
      _
    // Predicated region
    $region10: #{tpu_custom_call.1} parent=1 // pred_check
      _
    $region11: #{tpu_custom_call.1} parent=1 // pred_check_branch
      %16 = sbr.rel (0) target = $region13
    $region12: #{tpu_custom_call.1} parent=1 // pred_region
      _
    $region13: #{tpu_custom_call.1} parent=1 // pred_fallthru
      _
    %v17 = vld [vmem:[%s0] sm:$0x1]
    %s18 = sld [smem:[#allocation2]]
    %v19 = vstv %s18
    %v20 = vmul.f32 %v17, %v19
    %s21 = sld [smem:[#allocation3]]
    %v22 = vstv %s21
    %v23 = vadd.f32 %v20, %v22
    %24 = vst [vmem:[#allocation4] sm:$0x1] %v23
    // Predicated region
    $region14: #{tpu_custom_call.1} parent=1 // pred_check
      _
    $region15: #{tpu_custom_call.1} parent=1 // pred_check_branch
      %26 = sbr.rel (0) target = $region17
    $region16: #{tpu_custom_call.1} parent=1 // pred_region
      %s28 = ssub.s32 16, 16
      %29 = vsyncadd [#allocation5], %s28
      %s31 = sshll.u32 [#allocation4], 4
      %s32 = int_to_ptr.vmem [resolvable:$true] %s31
      %34 = dma.vmem_to_hbm [thread:$0]  %s32, 16, %s3, [#allocation5]
    $region17: #{tpu_custom_call.1} parent=1 // pred_fallthru
      _
    // Predicated region
    $region18: #{tpu_custom_call.1} parent=1 // pred_check
      _
    $region19: #{tpu_custom_call.1} parent=1 // pred_check_branch
      %36 = sbr.rel (0) target = $region21
    $region20: #{tpu_custom_call.1} parent=1 // pred_region
      %37 = dma.done [#allocation5], 16
    $region21: #{tpu_custom_call.1} parent=1 // pred_fallthru
      _
    %38 = vsyncpa [#allocation5], 1

</llo_original>
